<compile_context>
chip_gen: v6e
topology: v6e:2x2x1
jax: 0.10.0
libtpu: 0.0.40
codegen_flags: <defaults>
</compile_context>

<pallas_src>
import functools

import jax
import jax.numpy as jnp
from jax.experimental import pallas as pl
from jax.experimental.pallas import tpu as pltpu


def _round_up(x: int, m: int) -> int:
    return ((x + m - 1) // m) * m


def _fm_kernel(x_ref, vext_ref, v2s_ref, b_ref, o_ref, *, h_col: int,
               use_bf16_mxu: bool):
    """One batch tile of the FM forward pass.

    x_ref    : (TB, F)    f32   batch tile of features
    vext_ref : (F, H+1)   f32   [:, :H] = v, [:, H] = w  (fused weight column)
    v2s_ref  : (1, F)     f32   sum(v*v, axis=1)
    b_ref    : (1, 1)     f32   bias (SMEM scalar)
    o_ref    : (TB, 1)    f32   sigmoid scores
    """
    x = x_ref[...]                                    # (TB, F)
    v_ext = vext_ref[...]                             # (F, H+1)
    v2s = v2s_ref[...]                                # (1, F)
    b = b_ref[0, 0]                                   # scalar

    # Single fused MXU matmul: columns [0, H) give x@v, column H gives x@w.
    if use_bf16_mxu:
        xv = jnp.dot(x.astype(jnp.bfloat16), v_ext.astype(jnp.bfloat16),
                     preferred_element_type=jnp.float32)      # (TB, H+1)
    else:
        xv = jnp.dot(x, v_ext, preferred_element_type=jnp.float32)

    # first_order (without bias): static slice of the fused weight column.
    xw = xv[:, h_col:h_col + 1]                                # (TB, 1)

    # sum_h (x@v)_h^2 : sum over ALL columns of xv^2 minus the w column's xw^2.
    square_of_sum = jnp.sum(xv * xv, axis=1, keepdims=True) - xw * xw   # (TB,1)

    # sum_h (x^2 @ v^2)_h collapses to (x*x) . v2sum  (VPU + lane reduce).
    sum_of_square = jnp.sum((x * x) * v2s, axis=1, keepdims=True)       # (TB,1)

    score = xw + b + 0.5 * (square_of_sum - sum_of_square)              # (TB,1)
    o_ref[...] = jax.nn.sigmoid(score)


def fm_prepack_params(w, b, v):
    """One-time packing of FM parameters (hoist out of the forward path)."""
    F, H = v.shape
    v32 = v.astype(jnp.float32)
    w_col = jnp.reshape(w, (F, 1)).astype(jnp.float32)
    v_ext = jnp.concatenate([v32, w_col], axis=1)              # (F, H+1)
    v2sum = jnp.reshape(jnp.sum(v32 * v32, axis=1), (1, F))    # (1, F)
    b_smem = jnp.reshape(b, (1, 1)).astype(jnp.float32)        # (1, 1)
    return v_ext, v2sum, b_smem


def fm_forward_packed(x, packed, *, batch_tile: int = 512,
                      use_bf16_mxu: bool = False):
    """FM forward from pre-packed params. x:(B,F) -> (B,1)."""
    v_ext, v2sum, b_smem = packed
    F, Hp = v_ext.shape                 # Hp = H + 1
    H = Hp - 1

    x = x.astype(jnp.float32)
    B, Fx = x.shape
    assert Fx == F, "x feature dim must match v"

    # Batch tiling: no padding when the whole batch fits one tile; otherwise
    # pad only the ragged tail of the batch (F is never padded).
    if B <= batch_tile:
        TB, Bp = B, B
    else:
        TB = batch_tile
        Bp = _round_up(B, TB)
    x_in = x if Bp == B else jnp.pad(x, ((0, Bp - B), (0, 0)))
    nb = Bp // TB

    # VMEM budget: x double-buffer + resident params + output double-buffer.
    vmem_need = (2 * TB * F + F * Hp + F + 2 * TB) * 4
    vmem_limit = int(min(max(2 * vmem_need, 32 << 20), 64 << 20))

    kernel = functools.partial(_fm_kernel, h_col=H, use_bf16_mxu=use_bf16_mxu)

    out = pl.pallas_call(
        kernel,
        out_shape=jax.ShapeDtypeStruct((Bp, 1), jnp.float32),
        grid=(nb,),
        in_specs=[
            pl.BlockSpec((TB, F), lambda i: (i, 0)),       # x: tiled over batch
            pl.BlockSpec((F, Hp), lambda i: (0, 0)),       # V_ext: grid-invariant
            pl.BlockSpec((1, F), lambda i: (0, 0)),        # v2sum: grid-invariant
            pl.BlockSpec(memory_space=pltpu.MemorySpace.SMEM),  # bias scalar
        ],
        out_specs=pl.BlockSpec((TB, 1), lambda i: (i, 0)),
        compiler_params=pltpu.CompilerParams(
            dimension_semantics=("parallel",),   # batch axis -> both TCs on v7x
            vmem_limit_bytes=vmem_limit,
        ),
    )(x_in, v_ext, v2sum, b_smem)

    return out[:B]


def fm_forward(x, w, b, v, *, batch_tile: int = 512, use_bf16_mxu: bool = False):
    """Convenience wrapper: pack params then run the kernel."""
    packed = fm_prepack_params(w, b, v)
    return fm_forward_packed(x, packed, batch_tile=batch_tile,
                             use_bf16_mxu=use_bf16_mxu)


def init_params(key, feats_num, hidden_dim):
    k_w, k_b, k_v = jax.random.split(key, 3)
    # nn.Linear(feats_num, 1): uniform(-1/sqrt(F), 1/sqrt(F)) for weight & bias.
    bound = 1.0 / jnp.sqrt(jnp.float32(feats_num))
    w = jax.random.uniform(k_w, (feats_num, 1), jnp.float32, -bound, bound)
    b = jax.random.uniform(k_b, (1, 1), jnp.float32, -bound, bound)
    # xavier_uniform_ for v: uniform(-a, a), a = sqrt(6 / (F + H)).
    a = jnp.sqrt(6.0 / (feats_num + hidden_dim))
    v = jax.random.uniform(k_v, (feats_num, hidden_dim), jnp.float32, -a, a)
    return w, b, v


def fm_reference(x, w, b, v):
    first = x @ w + jnp.reshape(b, (1, 1))
    sq_of_sum = (x @ v) ** 2
    sum_of_sq = (x ** 2) @ (v ** 2)
    second = 0.5 * jnp.sum(sq_of_sum - sum_of_sq, axis=1, keepdims=True)
    return jax.nn.sigmoid(first + second)


if __name__ == "__main__":
    key = jax.random.PRNGKey(0)

    # Small shapes matching the module: single-tile path (no padding at all).
    feats_num, hidden_dim, batch = 16, 32, 8
    k_x, k_p, k_x2 = jax.random.split(key, 3)
    x = jax.random.normal(k_x, (batch, feats_num), jnp.float32)
    w, b, v = init_params(k_p, feats_num, hidden_dim)

    out = fm_forward(x, w, b, v)
    jax.block_until_ready(out)

    ref = fm_reference(x, w, b, v)
    assert out.shape == (batch, 1)
    assert jnp.allclose(out, ref, atol=1e-5, rtol=1e-5), (
        f"max abs err = {jnp.max(jnp.abs(out - ref))}")

    # Multi-tile path: ragged batch (pads only the batch tail), grid > 1.
    batch2 = 1030
    x2 = jax.random.normal(k_x2, (batch2, feats_num), jnp.float32)
    out2 = fm_forward(x2, w, b, v, batch_tile=512)
    jax.block_until_ready(out2)
    ref2 = fm_reference(x2, w, b, v)
    assert out2.shape == (batch2, 1)
    assert jnp.allclose(out2, ref2, atol=1e-5, rtol=1e-5), (
        f"max abs err = {jnp.max(jnp.abs(out2 - ref2))}")

    print("KERNEL_OK")
</pallas_src>

<mosaic_0001>
module attributes {stable_mosaic.version = 11 : i64} {
  func.func @_fm_kernel(%arg0: i32, %arg1: memref<8x16xf32, #tpu.memory_space<vmem>>, %arg2: memref<16x33xf32, #tpu.memory_space<vmem>>, %arg3: memref<1x16xf32, #tpu.memory_space<vmem>>, %arg4: memref<1x1xf32, #tpu.memory_space<smem>>, %arg5: memref<8x1xf32, #tpu.memory_space<vmem>>) attributes {dimension_semantics = [#tpu.dimension_semantics<parallel>], iteration_bounds = array<i64: 1>, scalar_prefetch = 0 : i64, scratch_operands = 0 : i64, tpu.core_type = #tpu.core_type<tc>, window_params = [{transform_indices = @transform_0, window_bounds = array<i64: 8, 16>}, {pipeline_mode = #tpu.pipeline_mode<synchronous>, transform_indices = @transform_1, window_bounds = array<i64: 16, 33>}, {pipeline_mode = #tpu.pipeline_mode<synchronous>, transform_indices = @transform_2, window_bounds = array<i64: 1, 16>}, {transform_indices = @transform_3, window_bounds = array<i64: 1, 1>}, {transform_indices = @transform_4, window_bounds = array<i64: 8, 1>}]} {
    %c0 = arith.constant 0 : index
    %c0_0 = arith.constant 0 : index
    %0 = vector.load %arg1[%c0, %c0_0] : memref<8x16xf32, #tpu.memory_space<vmem>>, vector<8x16xf32>
    %c0_1 = arith.constant 0 : index
    %c0_2 = arith.constant 0 : index
    %1 = vector.load %arg2[%c0_1, %c0_2] : memref<16x33xf32, #tpu.memory_space<vmem>>, vector<16x33xf32>
    %c0_3 = arith.constant 0 : index
    %c0_4 = arith.constant 0 : index
    %2 = vector.load %arg3[%c0_3, %c0_4] : memref<1x16xf32, #tpu.memory_space<vmem>>, vector<1x16xf32>
    %c0_5 = arith.constant 0 : index
    %c0_6 = arith.constant 0 : index
    %3 = memref.load %arg4[%c0_5, %c0_6] : memref<1x1xf32, #tpu.memory_space<smem>>
    %cst = arith.constant dense<0.000000e+00> : vector<8x33xf32>
    %4 = tpu.matmul %0, %1, %cst {dimension_numbers = #tpu.dot_dimension_numbers<[1], [0], [0], [1], [0, 0, 1, 1], [], []>} : vector<8x16xf32>, vector<16x33xf32>, vector<8x33xf32> -> vector<8x33xf32>
    %5 = vector.extract_strided_slice %4 {offsets = [0, 32], sizes = [8, 1], strides = [1, 1]} : vector<8x33xf32> to vector<8x1xf32>
    %6 = arith.mulf %4, %4 : vector<8x33xf32>
    %cst_7 = arith.constant dense<0.000000e+00> : vector<8xf32>
    %7 = vector.multi_reduction <add>, %6, %cst_7 [1] : vector<8x33xf32> to vector<8xf32>
    %8 = vector.shape_cast %7 : vector<8xf32> to vector<8x1xf32>
    %9 = arith.mulf %5, %5 : vector<8x1xf32>
    %10 = arith.subf %8, %9 : vector<8x1xf32>
    %11 = arith.mulf %0, %0 : vector<8x16xf32>
    %12 = vector.broadcast %2 : vector<1x16xf32> to vector<8x16xf32>
    %13 = arith.mulf %11, %12 : vector<8x16xf32>
    %cst_8 = arith.constant dense<0.000000e+00> : vector<8xf32>
    %14 = vector.multi_reduction <add>, %13, %cst_8 [1] : vector<8x16xf32> to vector<8xf32>
    %15 = vector.shape_cast %14 : vector<8xf32> to vector<8x1xf32>
    %16 = vector.broadcast %3 : f32 to vector<8x1xf32>
    %17 = arith.addf %5, %16 : vector<8x1xf32>
    %18 = arith.subf %10, %15 : vector<8x1xf32>
    %cst_9 = arith.constant 5.000000e-01 : f32
    %19 = vector.broadcast %cst_9 : f32 to vector<8x1xf32>
    %20 = arith.mulf %19, %18 : vector<8x1xf32>
    %21 = arith.addf %17, %20 : vector<8x1xf32>
    %22 = arith.negf %21 : vector<8x1xf32>
    %23 = math.exp %22 : vector<8x1xf32>
    %cst_10 = arith.constant 1.000000e+00 : f32
    %24 = vector.broadcast %cst_10 : f32 to vector<8x1xf32>
    %25 = arith.addf %24, %23 : vector<8x1xf32>
    %26 = arith.divf %24, %25 : vector<8x1xf32>
    %c0_11 = arith.constant 0 : index
    %c0_12 = arith.constant 0 : index
    %27 = vector.load %arg5[%c0_11, %c0_12] : memref<8x1xf32, #tpu.memory_space<vmem>>, vector<8x1xf32>
    tpu.vector_store %arg5[%c0_11, %c0_12], %26 {strides = array<i32>} : memref<8x1xf32, #tpu.memory_space<vmem>>, vector<8x1xf32>,
    return
  }
  func.func @transform_0(%arg0: i32) -> (i32, i32) {
    %c0_i32 = arith.constant 0 : i32
    %c0_i32_0 = arith.constant 0 : i32
    return %arg0, %c0_i32 : i32, i32
  }
  func.func @transform_1(%arg0: i32) -> (i32, i32) {
    %c0_i32 = arith.constant 0 : i32
    %c0_i32_0 = arith.constant 0 : i32
    %c0_i32_1 = arith.constant 0 : i32
    return %c0_i32, %c0_i32_0 : i32, i32
  }
  func.func @transform_2(%arg0: i32) -> (i32, i32) {
    %c0_i32 = arith.constant 0 : i32
    %c0_i32_0 = arith.constant 0 : i32
    %c0_i32_1 = arith.constant 0 : i32
    return %c0_i32, %c0_i32_0 : i32, i32
  }
  func.func @transform_3(%arg0: i32) -> (i32, i32) {
    %c0_i32 = arith.constant 0 : i32
    %c0_i32_0 = arith.constant 0 : i32
    %c0_i32_1 = arith.constant 0 : i32
    return %c0_i32, %c0_i32_0 : i32, i32
  }
  func.func @transform_4(%arg0: i32) -> (i32, i32) {
    %c0_i32 = arith.constant 0 : i32
    %c0_i32_0 = arith.constant 0 : i32
    return %arg0, %c0_i32 : i32, i32
  }
}

</mosaic_0001>

<llo_original>
// kernel: tpu_custom_call.1
$region0: #{tpu_custom_call.1}
  #allocation0 [shape = 'u32[]', space=smem, size = 0x4, offset = 0x4, fixed_abs, tag = 'smem constant byte address 0x4 - core index']
  #allocation1 [shape = 'u32[144,128]{1,0:T(1,128)}', space=vmem, size = 0x12000, scoped, tag = 'internal scratch']
  #allocation2 [shape = 'f32[1,1]{1,0:T(1,128)S(6)}', space=smem, size = 0x200, scoped, tag = 'scoped memory for tpu_custom_call.1']
  %s0 = inlined_call_operand.hbm [shape: f32[8,16], index: 0, kind: input, shape index: {}]
  %s1 = inlined_call_operand.hbm [shape: f32[16,33], index: 1, kind: input, shape index: {}]
  %s2 = inlined_call_operand.vmem [shape: f32[1,16], index: 2, kind: input, shape index: {}]
  %s3 = inlined_call_operand.<no memory space> [shape: f32[1,1], index: 3, kind: input, shape index: {}]
  %s4 = inlined_call_operand.vmem [shape: f32[8,1], index: 4, kind: output, shape index: {}]
  %s5 = sld [smem:[#allocation0]]
  $region34: #{tpu_custom_call.1} parent=0
    _
  %s7 = ssub.s32 1, %s5
  %s8 = scalar_select 0, %s7, %s5
  %9 = sst [smem:[#allocation2]] %s3
  $region1: #{tpu_custom_call.1} parent=0
    #allocation3 [shape = 'u8[4096]{0}', space=vmem, size = 0x1000, scoped, tag = 'input window, operand 0, single buffered']
    #allocation4 [shape = 's32[1]{0}', space=sflag, size = 0x4, scoped, tag = 'scoped memory for tpu_custom_call.1']
    #allocation5 [shape = 'u8[8192]{0}', space=vmem, size = 0x2000, scoped, tag = 'input window, operand 1, single buffered']
    #allocation6 [shape = 's32[1]{0}', space=sflag, size = 0x4, scoped, tag = 'scoped memory for tpu_custom_call.1']
    %10 = vsyncpa [#allocation4], 0
    %11 = vsyncpa [#allocation6], 0
    // Predicated region
    $region2: #{tpu_custom_call.1} parent=1 // pred_check
      _
    $region3: #{tpu_custom_call.1} parent=1 // pred_check_branch
      %13 = sbr.rel (0) target = $region5
    $region4: #{tpu_custom_call.1} parent=1 // pred_region
      %s15 = ssub.s32 128, 128
      %16 = vsyncadd [#allocation4], %s15
      %s18 = sshll.u32 [#allocation3], 4
      %s19 = int_to_ptr.vmem [resolvable:$true] %s18
      %21 = dma.hbm_to_vmem [thread:$0]  %s0, 128, %s19, [#allocation4]
    $region5: #{tpu_custom_call.1} parent=1 // pred_fallthru
      _
    // Predicated region
    $region6: #{tpu_custom_call.1} parent=1 // pred_check
      _
    $region7: #{tpu_custom_call.1} parent=1 // pred_check_branch
      %23 = sbr.rel (0) target = $region9
    $region8: #{tpu_custom_call.1} parent=1 // pred_region
      %s25 = ssub.s32 256, 256
      %26 = vsyncadd [#allocation6], %s25
      %s27 = sshll.u32 [#allocation5], 4
      %s28 = int_to_ptr.vmem [resolvable:$true] %s27
      %33 = dma.hbm_to_vmem [thread:$0]  %s1, 256, %s28, [#allocation6], 128, 128, 8
    $region9: #{tpu_custom_call.1} parent=1 // pred_fallthru
      _
    // Predicated region
    $region10: #{tpu_custom_call.1} parent=1 // pred_check
      _
    $region11: #{tpu_custom_call.1} parent=1 // pred_check_branch
      %35 = sbr.rel (0) target = $region13
    $region12: #{tpu_custom_call.1} parent=1 // pred_region
      _
    $region13: #{tpu_custom_call.1} parent=1 // pred_fallthru
      _
    // Predicated region
    $region14: #{tpu_custom_call.1} parent=1 // pred_check
      _
    $region15: #{tpu_custom_call.1} parent=1 // pred_check_branch
      %37 = sbr.rel (0) target = $region17
    $region16: #{tpu_custom_call.1} parent=1 // pred_region
      _
    $region17: #{tpu_custom_call.1} parent=1 // pred_fallthru
      _
    // Predicated region
    $region18: #{tpu_custom_call.1} parent=1 // pred_check
      _
    $region19: #{tpu_custom_call.1} parent=1 // pred_check_branch
      %39 = sbr.rel (0) target = $region21
    $region20: #{tpu_custom_call.1} parent=1 // pred_region
      %40 = dma.done [#allocation4], 128
    $region21: #{tpu_custom_call.1} parent=1 // pred_fallthru
      _
    // Predicated region
    $region22: #{tpu_custom_call.1} parent=1 // pred_check
      _
    $region23: #{tpu_custom_call.1} parent=1 // pred_check_branch
      %42 = sbr.rel (0) target = $region25
    $region24: #{tpu_custom_call.1} parent=1 // pred_region
      %43 = dma.done [#allocation6], 256
    $region25: #{tpu_custom_call.1} parent=1 // pred_fallthru
      _
    %v44 = vld [vmem:[#allocation3] sm:$0xff]
    %v45 = vld [vmem:[#allocation5] sm:$0xff]
    %v46 = vld [vmem:[#allocation5 + $0x8] sm:$0xff]
    %v47 = vld [vmem:[%s2] sm:$0x1]
    %s48 = sld [smem:[#allocation2]]
    %vm49 = vcmask 130048
    %v51 = vsel %vm49, %v44, 0
    %53 = vmatprep.subr.mxu0 0.0
    %54 = vmatpush1.msra.mxu0 0.0
    %55 = vmatprep.subr.mxu0 0.0
    %56 = vmatpush1.msra.mxu0 0.0
    %57 = vmatprep.subr.mxu0 0.0
    %58 = vmatpush1.msra.mxu0 0.0
    %59 = vmatprep.subr.mxu0 0.0
    %60 = vmatpush1.msra.mxu0 0.0
    %61 = vmatprep.subr.mxu0 0.0
    %62 = vmatpush1.msra.mxu0 0.0
    %63 = vmatprep.subr.mxu0 0.0
    %64 = vmatpush1.msra.mxu0 0.0
    %65 = vmatprep.subr.mxu0 0.0
    %66 = vmatpush1.msra.mxu0 0.0
    %67 = vmatprep.subr.mxu0 0.0
    %68 = vmatpush1.msra.mxu0 0.0
    %69 = vmatprep.subr.mxu0 0.0
    %70 = vmatpush1.msra.mxu0 0.0
    %71 = vmatprep.subr.mxu0 0.0
    %72 = vmatpush1.msra.mxu0 0.0
    %73 = vmatprep.subr.mxu0 0.0
    %74 = vmatpush1.msra.mxu0 0.0
    %75 = vmatprep.subr.mxu0 0.0
    %76 = vmatpush1.msra.mxu0 0.0
    %77 = vmatprep.subr.mxu0 0.0
    %78 = vmatpush1.msra.mxu0 0.0
    %79 = vmatprep.subr.mxu0 0.0
    %80 = vmatpush1.msra.mxu0 0.0
    %81 = vmatprep.subr.mxu0 0.0
    %82 = vmatpush1.msra.mxu0 %v46
    %83 = vmatprep.subr.mxu0 0.0
    %84 = vmatpush1.msra.mxu0 %v45
    %85 = vmatprep.subr.mxu0 0.0
    %86 = vmatpush2.msra.mxu0 0.0
    %87 = vmatprep.subr.mxu0 0.0
    %88 = vmatpush2.msra.mxu0 0.0
    %89 = vmatprep.subr.mxu0 0.0
    %90 = vmatpush2.msra.mxu0 0.0
    %91 = vmatprep.subr.mxu0 0.0
    %92 = vmatpush2.msra.mxu0 0.0
    %93 = vmatprep.subr.mxu0 0.0
    %94 = vmatpush2.msra.mxu0 0.0
    %95 = vmatprep.subr.mxu0 0.0
    %96 = vmatpush2.msra.mxu0 0.0
    %97 = vmatprep.subr.mxu0 0.0
    %98 = vmatpush2.msra.mxu0 0.0
    %99 = vmatprep.subr.mxu0 0.0
    %100 = vmatpush2.msra.mxu0 0.0
    %101 = vmatprep.subr.mxu0 0.0
    %102 = vmatpush2.msra.mxu0 0.0
    %103 = vmatprep.subr.mxu0 0.0
    %104 = vmatpush2.msra.mxu0 0.0
    %105 = vmatprep.subr.mxu0 0.0
    %106 = vmatpush2.msra.mxu0 0.0
    %107 = vmatprep.subr.mxu0 0.0
    %108 = vmatpush2.msra.mxu0 0.0
    %109 = vmatprep.subr.mxu0 0.0
    %110 = vmatpush2.msra.mxu0 0.0
    %111 = vmatprep.subr.mxu0 0.0
    %112 = vmatpush2.msra.mxu0 0.0
    %113 = vmatprep.subr.mxu0 0.0
    %114 = vmatpush2.msra.mxu0 0.0
    %115 = vmatprep.subr.mxu0 0.0
    %116 = vmatpush2.msra.mxu0 0.0
    %117 = vmatprep.mubr.f32.mxu0 0.0
    %118 = vmatmul.mubr.f32.gmra.mxu0 %v51
    %v119 = vpop.f32.mrf.mxu0
    %v120 = vadd.f32 0.0, %v119
    %v121 = vpop.f32.mrf.mxu0
    %122 = vdwg.mxu0
    %v123 = vmul.f32 %v120, %v120
    %vm124 = vcmask 269312
    %v125 = vsel %vm124, %v123, 0.0
    %126 = vadd.xlane.f32.xlu0 %v125
    %v127 = vpop.xlane.xlu0 %126
    %v128 = vsub.f32 %v127, %v123
    %v129 = vmul.f32 %v44, %v44
    %v131 = vlaneseq
    %v132 = vshrl.u32 %v131, 7
    %v133 = vsub.s32 0, %v132
    %v134 = vrot.slane %v47, %v133
    %v136 = vmul.f32 %v129, %v134
    %v137 = vsel %vm49, %v136, 0.0
    %138 = vadd.xlane.f32.xlu0 %v137
    %v139 = vpop.xlane.xlu0 %138
    %v140 = vstv %s48
    %v141 = vadd.f32 %v120, %v140
    %v142 = vsub.f32 %v128, %v139
    %v143 = vmul.f32 %v142, 0.5
    %v144 = vadd.f32 %v141, %v143
    %v145 = vxor.u32 %v144, 2147483648
    %v146 = vmul.f32 %v145, 1.442695
    %v147 = vpow.pop %v146
    %v148 = vadd.f32 %v147, 1.0
    %v149 = vrcp.pop %v148
    %v150 = vmul.f32 1.0, %v149
    %152 = vrot.lane.b32.xlu0 %v150, 96
    %v153 = vpop.permute.xlu0 %152
    %vm155 = vcmask 7168
    %156 = vst.msk [vmem:[%s4] sm:$0xff] %vm155, %v153
    // Predicated region
    $region26: #{tpu_custom_call.1} parent=1 // pred_check
      _
    $region27: #{tpu_custom_call.1} parent=1 // pred_check_branch
      %158 = sbr.rel (0) target = $region29
    $region28: #{tpu_custom_call.1} parent=1 // pred_region
      _
    $region29: #{tpu_custom_call.1} parent=1 // pred_fallthru
      _
    // Predicated region
    $region30: #{tpu_custom_call.1} parent=1 // pred_check
      _
    $region31: #{tpu_custom_call.1} parent=1 // pred_check_branch
      %160 = sbr.rel (0) target = $region33
    $region32: #{tpu_custom_call.1} parent=1 // pred_region
      _
    $region33: #{tpu_custom_call.1} parent=1 // pred_fallthru
      _
    %161 = vsyncpa [#allocation4], 1
    %162 = vsyncpa [#allocation6], 1

</llo_original>
